<compile_context>
chip_gen: v7x
topology: tpu7x:2x2x1
jax: 0.10.0
libtpu: 0.0.40
codegen_flags: <defaults>
</compile_context>

<pallas_src>
import jax
import jax.numpy as jnp
from jax.experimental import pallas as pl
from jax.experimental.pallas import tpu as pltpu


_NEG_LARGE = -1e30  # pad-lane bias mask (finite; exp underflows to 0, max unaffected)
                    # NOTE: would become -inf if the output dtype were ever fp16, but
                    # padded lanes are sliced off before being observed.


def _round_up(x, m):
    return (x + m - 1) // m * m


# --------------------------------------------------------------------------
# Kernels
# --------------------------------------------------------------------------

def _mlp_linear_resident_kernel(x_ref, w_ref, b_ref, o_ref):
    """Single-K-step path: whole weight is VMEM-resident, no accumulator scratch."""
    logits = jnp.dot(x_ref[...], w_ref[...],
                     preferred_element_type=jnp.float32) + b_ref[...]
    m = jnp.max(logits, axis=-1, keepdims=True)
    shifted = logits - m
    lse = jnp.log(jnp.sum(jnp.exp(shifted), axis=-1, keepdims=True))
    o_ref[...] = (shifted - lse).astype(o_ref.dtype)


def _mlp_linear_ktiled_kernel(x_ref, w_ref, b_ref, o_ref, acc_ref):
    """K-streamed path: f32 VMEM accumulator, epilogue only on the last K step."""
    k = pl.program_id(1)

    @pl.when(k == 0)
    def _():
        acc_ref[...] = jnp.zeros_like(acc_ref)

    acc_ref[...] += jnp.dot(x_ref[...], w_ref[...],
                            preferred_element_type=jnp.float32)

    @pl.when(k == pl.num_programs(1) - 1)
    def _():
        logits = acc_ref[...] + b_ref[...]
        m = jnp.max(logits, axis=-1, keepdims=True)
        shifted = logits - m
        lse = jnp.log(jnp.sum(jnp.exp(shifted), axis=-1, keepdims=True))
        o_ref[...] = (shifted - lse).astype(o_ref.dtype)


# --------------------------------------------------------------------------
# One-time parameter layout prep (NOT per-forward)
# --------------------------------------------------------------------------

def prepare_mlp_linear_params(weight, bias, compute_dtype=jnp.bfloat16):
    """weight [out_dim, in_dim] -> transposed, bf16, lane-padded [in_dim, out_p]
    with out_p = round_up(out_dim, 256); bias -> (1, out_p) f32 with padded
    lanes set to a large negative value so log_softmax ignores them."""
    out_dim, in_dim = weight.shape
    out_p = _round_up(out_dim, 256)   # full MXU column width on v6e/v7x
    w_t = jnp.zeros((in_dim, out_p), compute_dtype).at[:, :out_dim].set(
        weight.T.astype(compute_dtype))
    b_p = jnp.full((1, out_p), _NEG_LARGE, jnp.float32).at[0, :out_dim].set(
        bias.astype(jnp.float32))
    return w_t, b_p, out_dim


# --------------------------------------------------------------------------
# Tiling / VMEM heuristics
# --------------------------------------------------------------------------

def _vmem_budget_bytes():
    """~75% of physical per-core VMEM: 96 MiB on v5e/v6e, 48 MiB on v7x.
    Falls back to the conservative v7x budget if the query is unavailable."""
    try:
        cap = int(pltpu.get_tpu_info().vmem_capacity_bytes)
    except Exception:
        cap = 64 * 1024 * 1024
    return (cap * 3) // 4


def _select_tiles(n, in_dim, out_p, budget, x_bytes, out_bytes):
    """Returns (tm, tk, ktiled)."""
    n_pad = _round_up(max(n, 1), 8)

    def vmem_use(tm, tk, ktiled):
        return (2 * tm * tk * x_bytes            # x tile, double-buffered
                + 2 * tk * out_p * x_bytes       # weight tile, double-buffered
                + 2 * tm * out_p * out_bytes     # output tile, double-buffered
                + (tm * out_p * 4 if ktiled else 0)  # f32 accumulator scratch
                + out_p * 4)                     # bias (f32, fully resident)

    tm_opts = (1024, 768, 512, 384, 256, 128, 64, 32, 16, 8)

    # Path A: full weight residency (single K step, weight DMA'd once).
    if 2 * in_dim * out_p * x_bytes <= int(0.55 * budget):
        for tm in tm_opts:
            tm_e = min(tm, n_pad)
            if vmem_use(tm_e, in_dim, False) <= budget:
                return tm_e, in_dim, False

    # Path B: stream the weight along K.  Keep tm as large as possible
    # (arithmetic intensity per weight byte ~ tm); tk = largest 128-multiple
    # divisor of in_dim that fits.
    tk_opts = [t for t in (2048, 1024, 512, 256, 128) if in_dim % t == 0]
    if not tk_opts:
        # TODO(synk): zero-pad in_dim to a multiple of 128 for awkward sizes
        # instead of falling back to a full-width K tile.
        tk_opts = [in_dim]
    for tm in tm_opts:
        tm_e = min(tm, n_pad)
        for tk in tk_opts:
            if vmem_use(tm_e, tk, True) <= budget:
                return tm_e, tk, True
    return min(8, n_pad), tk_opts[-1], True


# --------------------------------------------------------------------------
# Forward
# --------------------------------------------------------------------------

def mlp_linear_forward(x, w_t, b_p, out_dim, *, vmem_limit_bytes=None):
    """x: [N, in_dim]; w_t: [in_dim, out_p] (prepared, bf16); b_p: [1, out_p] f32."""
    n, in_dim = x.shape
    assert w_t.shape[0] == in_dim
    out_p = w_t.shape[1]
    out_dtype = x.dtype

    # Same compute dtype for both MXU operands (bf16); accumulation stays f32.
    x_c = x.astype(w_t.dtype)

    budget = int(vmem_limit_bytes) if vmem_limit_bytes is not None else _vmem_budget_bytes()
    x_bytes = jnp.dtype(w_t.dtype).itemsize
    out_bytes = jnp.dtype(out_dtype).itemsize
    tm, tk, ktiled = _select_tiles(n, in_dim, out_p, budget, x_bytes, out_bytes)

    # Keep >= 2 row steps when N allows it, so the "parallel" row axis can be
    # sharded across both TensorCores on v7x.
    if n >= 16 and pl.cdiv(n, tm) == 1:
        tm = _round_up((n + 1) // 2, 8)

    cparams = pltpu.CompilerParams(
        dimension_semantics=("parallel", "arbitrary") if ktiled else ("parallel",),
        vmem_limit_bytes=budget,
    )

    if ktiled:
        grid = (pl.cdiv(n, tm), in_dim // tk)
        out_padded = pl.pallas_call(
            _mlp_linear_ktiled_kernel,
            out_shape=jax.ShapeDtypeStruct((n, out_p), out_dtype),
            grid_spec=pltpu.PrefetchScalarGridSpec(
                num_scalar_prefetch=0,
                grid=grid,
                in_specs=[
                    pl.BlockSpec((tm, tk), lambda i, k: (i, k)),      # x row/K tile
                    pl.BlockSpec((tk, out_p), lambda i, k: (k, 0)),   # weight K tile
                    pl.BlockSpec((1, out_p), lambda i, k: (0, 0)),    # bias, resident
                ],
                out_specs=pl.BlockSpec((tm, out_p), lambda i, k: (i, 0)),
                scratch_shapes=[pltpu.VMEM((tm, out_p), jnp.float32)],
            ),
            compiler_params=cparams,
        )(x_c, w_t, b_p)
    else:
        grid = (pl.cdiv(n, tm),)
        out_padded = pl.pallas_call(
            _mlp_linear_resident_kernel,
            out_shape=jax.ShapeDtypeStruct((n, out_p), out_dtype),
            grid_spec=pltpu.PrefetchScalarGridSpec(
                num_scalar_prefetch=0,
                grid=grid,
                in_specs=[
                    pl.BlockSpec((tm, in_dim), lambda i: (i, 0)),     # x row tile
                    pl.BlockSpec((in_dim, out_p), lambda i: (0, 0)),  # weight, resident
                    pl.BlockSpec((1, out_p), lambda i: (0, 0)),       # bias, resident
                ],
                out_specs=pl.BlockSpec((tm, out_p), lambda i: (i, 0)),
            ),
            compiler_params=cparams,
        )(x_c, w_t, b_p)

    # Slice off the lane padding (cheap wrapper-side slice).
    return out_padded[:, :out_dim]


# --------------------------------------------------------------------------
# Init matching nn.Linear.reset_parameters()
# --------------------------------------------------------------------------

def init_mlp_linear_params(key, in_dim, out_dim, dtype=jnp.float32):
    """kaiming_uniform(a=sqrt(5)) on weight -> U(-1/sqrt(in_dim), 1/sqrt(in_dim));
    bias -> U(-1/sqrt(in_dim), 1/sqrt(in_dim))."""
    kw, kb = jax.random.split(key)
    bound = 1.0 / jnp.sqrt(jnp.asarray(in_dim, dtype=jnp.float32))
    weight = jax.random.uniform(kw, (out_dim, in_dim), dtype, -bound, bound)
    bias = jax.random.uniform(kb, (out_dim,), dtype, -bound, bound)
    return weight, bias


if __name__ == "__main__":
    key = jax.random.PRNGKey(0)
    k_x, k_p = jax.random.split(key)

    n, in_dim, out_dim = 8, 32, 16
    x = jax.random.normal(k_x, (n, in_dim), jnp.float32)
    weight, bias = init_mlp_linear_params(k_p, in_dim, out_dim)

    # One-time layout prep (transpose + bf16 + 256-lane padding).
    w_t, b_p, out_dim_logical = prepare_mlp_linear_params(weight, bias)

    out = mlp_linear_forward(x, w_t, b_p, out_dim_logical)
    out = jax.block_until_ready(out)
    assert out.shape == (n, out_dim)

    # Reference with the same bf16 operand rounding, f32 accumulation (tight check).
    logits_bf = jnp.dot(x.astype(jnp.bfloat16), weight.T.astype(jnp.bfloat16),
                        preferred_element_type=jnp.float32) + bias.astype(jnp.float32)
    ref_bf = jax.nn.log_softmax(logits_bf, axis=-1)
    assert jnp.allclose(out, ref_bf, atol=1e-3, rtol=1e-3)

    # Loose check against the full-f32 PyTorch semantics.
    ref_f32 = jax.nn.log_softmax(x @ weight.T + bias, axis=-1)
    assert jnp.allclose(out, ref_f32, atol=5e-2, rtol=5e-2)

    print("KERNEL_OK")
</pallas_src>

<mosaic_0001>
module attributes {stable_mosaic.version = 11 : i64} {
  func.func @_mlp_linear_resident_kernel(%arg0: i32, %arg1: memref<8x32xbf16, #tpu.memory_space<vmem>>, %arg2: memref<32x256xbf16, #tpu.memory_space<vmem>>, %arg3: memref<1x256xf32, #tpu.memory_space<vmem>>, %arg4: memref<8x256xf32, #tpu.memory_space<vmem>>) attributes {dimension_semantics = [#tpu.dimension_semantics<parallel>], iteration_bounds = array<i64: 1>, scalar_prefetch = 0 : i64, scratch_operands = 0 : i64, tpu.core_type = #tpu.core_type<tc>, window_params = [{transform_indices = @transform_0, window_bounds = array<i64: 8, 32>}, {pipeline_mode = #tpu.pipeline_mode<synchronous>, transform_indices = @transform_1, window_bounds = array<i64: 32, 256>}, {pipeline_mode = #tpu.pipeline_mode<synchronous>, transform_indices = @transform_2, window_bounds = array<i64: 1, 256>}, {transform_indices = @transform_3, window_bounds = array<i64: 8, 256>}]} {
    %c0 = arith.constant 0 : index
    %c0_0 = arith.constant 0 : index
    %0 = vector.load %arg1[%c0, %c0_0] : memref<8x32xbf16, #tpu.memory_space<vmem>>, vector<8x32xbf16>
    %c0_1 = arith.constant 0 : index
    %c0_2 = arith.constant 0 : index
    %1 = vector.load %arg2[%c0_1, %c0_2] : memref<32x256xbf16, #tpu.memory_space<vmem>>, vector<32x256xbf16>
    %cst = arith.constant dense<0.000000e+00> : vector<8x256xf32>
    %2 = tpu.matmul %0, %1, %cst {dimension_numbers = #tpu.dot_dimension_numbers<[1], [0], [0], [1], [0, 0, 1, 1], [], []>} : vector<8x32xbf16>, vector<32x256xbf16>, vector<8x256xf32> -> vector<8x256xf32>
    %c0_3 = arith.constant 0 : index
    %c0_4 = arith.constant 0 : index
    %3 = vector.load %arg3[%c0_3, %c0_4] : memref<1x256xf32, #tpu.memory_space<vmem>>, vector<1x256xf32>
    %4 = vector.broadcast %3 : vector<1x256xf32> to vector<8x256xf32>
    %5 = arith.addf %2, %4 : vector<8x256xf32>
    %cst_5 = arith.constant dense<0xFF800000> : vector<8xf32>
    %6 = vector.multi_reduction <maximumf>, %5, %cst_5 [1] : vector<8x256xf32> to vector<8xf32>
    %7 = vector.shape_cast %6 : vector<8xf32> to vector<8x1xf32>
    %8 = vector.broadcast %7 : vector<8x1xf32> to vector<8x256xf32>
    %9 = arith.subf %5, %8 : vector<8x256xf32>
    %10 = math.exp %9 : vector<8x256xf32>
    %cst_6 = arith.constant dense<0.000000e+00> : vector<8xf32>
    %11 = vector.multi_reduction <add>, %10, %cst_6 [1] : vector<8x256xf32> to vector<8xf32>
    %12 = vector.shape_cast %11 : vector<8xf32> to vector<8x1xf32>
    %13 = math.log %12 : vector<8x1xf32>
    %14 = vector.broadcast %13 : vector<8x1xf32> to vector<8x256xf32>
    %15 = arith.subf %9, %14 : vector<8x256xf32>
    %c0_7 = arith.constant 0 : index
    %c0_8 = arith.constant 0 : index
    %16 = vector.load %arg4[%c0_7, %c0_8] : memref<8x256xf32, #tpu.memory_space<vmem>>, vector<8x256xf32>
    tpu.vector_store %arg4[%c0_7, %c0_8], %15 {strides = array<i32>} : memref<8x256xf32, #tpu.memory_space<vmem>>, vector<8x256xf32>,
    return
  }
  func.func @transform_0(%arg0: i32) -> (i32, i32) {
    %c0_i32 = arith.constant 0 : i32
    %c0_i32_0 = arith.constant 0 : i32
    return %arg0, %c0_i32 : i32, i32
  }
  func.func @transform_1(%arg0: i32) -> (i32, i32) {
    %c0_i32 = arith.constant 0 : i32
    %c0_i32_0 = arith.constant 0 : i32
    %c0_i32_1 = arith.constant 0 : i32
    return %c0_i32, %c0_i32_0 : i32, i32
  }
  func.func @transform_2(%arg0: i32) -> (i32, i32) {
    %c0_i32 = arith.constant 0 : i32
    %c0_i32_0 = arith.constant 0 : i32
    %c0_i32_1 = arith.constant 0 : i32
    return %c0_i32, %c0_i32_0 : i32, i32
  }
  func.func @transform_3(%arg0: i32) -> (i32, i32) {
    %c0_i32 = arith.constant 0 : i32
    %c0_i32_0 = arith.constant 0 : i32
    return %arg0, %c0_i32 : i32, i32
  }
}

</mosaic_0001>

<llo_original>
// kernel: tpu_custom_call.1
$region0: #{tpu_custom_call.1}
  #allocation0 [shape = 'u32[]', space=smem, size = 0x4, offset = 0x4, fixed_abs, tag = 'smem constant byte address 0x4 - core index']
  #allocation1 [shape = 'u32[144,128]{1,0:T(1,128)}', space=vmem, size = 0x12000, scoped, tag = 'internal scratch']
  %s0 = inlined_call_operand.hbm [shape: bf16[8,32], index: 0, kind: input, shape index: {}]
  %s1 = inlined_call_operand.hbm [shape: bf16[32,256], index: 1, kind: input, shape index: {}]
  %s2 = inlined_call_operand.vmem [shape: f32[1,256], index: 2, kind: input, shape index: {}]
  %s3 = inlined_call_operand.hbm [shape: f32[8,256], index: 3, kind: output, shape index: {}]
  %s4 = sld [smem:[#allocation0]]
  $region30: #{tpu_custom_call.1} parent=0
    _
  %s6 = ssub.s32 1, %s4
  %s7 = scalar_select 0, %s6, %s4
  $region1: #{tpu_custom_call.1} parent=0
    #allocation2 [shape = 'u8[2048]{0}', space=vmem, size = 0x800, scoped, tag = 'input window, operand 0, single buffered']
    #allocation3 [shape = 's32[1]{0}', space=sflag, size = 0x4, scoped, tag = 'scoped memory for tpu_custom_call.1']
    #allocation4 [shape = 's32[1]{0}', space=sflag, size = 0x4, scoped, tag = 'scoped memory for tpu_custom_call.1']
    #allocation5 [shape = 'u8[16384]{0}', space=vmem, size = 0x4000, scoped, tag = 'input window, operand 1, single buffered']
    #allocation6 [shape = 's32[1]{0}', space=sflag, size = 0x4, scoped, tag = 'scoped memory for tpu_custom_call.1']
    #allocation7 [shape = 'u8[8192]{0}', space=vmem, size = 0x2000, scoped, tag = 'output window, operand 0, single buffered']
    %8 = vsyncpa [#allocation3], 0
    %9 = vsyncpa [#allocation6], 0
    %10 = vsyncpa [#allocation4], 0
    // Predicated region
    $region2: #{tpu_custom_call.1} parent=1 // pred_check
      _
    $region3: #{tpu_custom_call.1} parent=1 // pred_check_branch
      %12 = sbr.rel (0) target = $region5
    $region4: #{tpu_custom_call.1} parent=1 // pred_region
      %s14 = ssub.s32 64, 64
      %15 = vsyncadd [#allocation3], %s14
      %s17 = sshll.u32 [#allocation2], 4
      %s18 = int_to_ptr.vmem [resolvable:$true] %s17
      %20 = dma.hbm_to_vmem [thread:$0]  %s0, 64, %s18, [#allocation3]
    $region5: #{tpu_custom_call.1} parent=1 // pred_fallthru
      _
    // Predicated region
    $region6: #{tpu_custom_call.1} parent=1 // pred_check
      _
    $region7: #{tpu_custom_call.1} parent=1 // pred_check_branch
      %22 = sbr.rel (0) target = $region9
    $region8: #{tpu_custom_call.1} parent=1 // pred_region
      %s24 = ssub.s32 512, 512
      %25 = vsyncadd [#allocation6], %s24
      %s26 = sshll.u32 [#allocation5], 4
      %s27 = int_to_ptr.vmem [resolvable:$true] %s26
      %32 = dma.hbm_to_vmem [thread:$0]  %s1, 512, %s27, [#allocation6], 128, 128, 8
    $region9: #{tpu_custom_call.1} parent=1 // pred_fallthru
      _
    // Predicated region
    $region10: #{tpu_custom_call.1} parent=1 // pred_check
      _
    $region11: #{tpu_custom_call.1} parent=1 // pred_check_branch
      %34 = sbr.rel (0) target = $region13
    $region12: #{tpu_custom_call.1} parent=1 // pred_region
      _
    $region13: #{tpu_custom_call.1} parent=1 // pred_fallthru
      _
    // Predicated region
    $region14: #{tpu_custom_call.1} parent=1 // pred_check
      _
    $region15: #{tpu_custom_call.1} parent=1 // pred_check_branch
      %36 = sbr.rel (0) target = $region17
    $region16: #{tpu_custom_call.1} parent=1 // pred_region
      %37 = dma.done [#allocation3], 64
    $region17: #{tpu_custom_call.1} parent=1 // pred_fallthru
      _
    // Predicated region
    $region18: #{tpu_custom_call.1} parent=1 // pred_check
      _
    $region19: #{tpu_custom_call.1} parent=1 // pred_check_branch
      %39 = sbr.rel (0) target = $region21
    $region20: #{tpu_custom_call.1} parent=1 // pred_region
      %40 = dma.done [#allocation6], 512
    $region21: #{tpu_custom_call.1} parent=1 // pred_fallthru
      _
    %v42 = vld [vmem:[#allocation2] sm:$0xf]
    %v43 = vld [vmem:[#allocation5] sm:$0xff]
    %v44 = vld [vmem:[#allocation5 + $0x8] sm:$0xff]
    %v45 = vld [vmem:[#allocation5 + $0x10] sm:$0xff]
    %v46 = vld [vmem:[#allocation5 + $0x18] sm:$0xff]
    %v47 = vld [vmem:[%s2] sm:$0x3]
    %v49 = vlaneseq
    %v50 = vshrl.u32 %v49, 7
    %v51 = vsub.s32 0, %v50
    %v52 = vrot.slane %v47, %v51
    %v53 = vlaneseq
    %v54 = vshrl.u32 %v53, 7
    %v55 = vsub.s32 1, %v54
    %v56 = vrot.slane %v47, %v55
    %v63 = vunpack.c.l.b16 %v43
    %v64 = vunpack.c.h.b16 %v43
    %v65 = vunpack.c.l.b16 %v44
    %v66 = vunpack.c.h.b16 %v44
    %v67 = vunpack.c.l.b16 %v45
    %v68 = vunpack.c.h.b16 %v45
    %v69 = vunpack.c.l.b16 %v46
    %v70 = vunpack.c.h.b16 %v46
    %v71 = vpack.c.b16 %v65, %v63
    %v72 = vpack.c.b16 %v66, %v64
    %v73 = vpack.c.b16 %v69, %v67
    %v74 = vpack.c.b16 %v70, %v68
    %vm79 = vcmask 261120
    %v81 = vsel %vm79, %v42, 0
    %83 = vmatprep.subr.bf16.mxu0 %v72
    %84 = vmatpush1.bf16.msra.mxu0 %v71
    %85 = vmatprep.subr.bf16.mxu0 %v74
    %86 = vmatpush1.bf16.msra.mxu0 %v73
    %87 = vmatprep.subr.bf16.mxu0 0
    %88 = vmatpush1.bf16.msra.mxu0 0
    %89 = vmatprep.subr.bf16.mxu0 0
    %90 = vmatpush1.bf16.msra.mxu0 0
    %91 = vmatprep.subr.bf16.mxu0 0
    %92 = vmatpush1.bf16.msra.mxu0 0
    %93 = vmatprep.subr.bf16.mxu0 0
    %94 = vmatpush1.bf16.msra.mxu0 0
    %95 = vmatprep.subr.bf16.mxu0 0
    %96 = vmatpush1.bf16.msra.mxu0 0
    %97 = vmatprep.subr.bf16.mxu0 0
    %98 = vmatpush1.bf16.msra.mxu0 0
    %99 = vmatprep.subr.bf16.mxu0 0
    %100 = vmatpush1.bf16.msra.mxu0 0
    %101 = vmatprep.subr.bf16.mxu0 0
    %102 = vmatpush1.bf16.msra.mxu0 0
    %103 = vmatprep.subr.bf16.mxu0 0
    %104 = vmatpush1.bf16.msra.mxu0 0
    %105 = vmatprep.subr.bf16.mxu0 0
    %106 = vmatpush1.bf16.msra.mxu0 0
    %107 = vmatprep.subr.bf16.mxu0 0
    %108 = vmatpush1.bf16.msra.mxu0 0
    %109 = vmatprep.subr.bf16.mxu0 0
    %110 = vmatpush1.bf16.msra.mxu0 0
    %111 = vmatprep.subr.bf16.mxu0 0
    %112 = vmatpush1.bf16.msra.mxu0 0
    %113 = vmatprep.subr.bf16.mxu0 0
    %114 = vmatpush1.bf16.msra.mxu0 0
    %115 = vmatprep.mubr.bf16.mxu0 0
    %116 = vmatmul.mubr.bf16.gmra.mrb[0].mxu0 %v81
    %v117 = vpop.f32.mrb[0].mxu0
    %v118 = vadd.f32 %v52, %v117
    %v119 = vpop.f32.mrb[0].mxu0
    %v120 = vadd.f32 %v56, %v119
    %v121 = vpop.f32.mrb[0].mxu0
    %v122 = vpop.f32.mrb[0].mxu0
    %123 = vdwg.mxu0
    %v124 = vmax.f32 %v118, %v120
    %125 = vmax.xlane.f32.xlu0 %v124
    %v126 = vpop.xlane.xlu0 %125
    %v127 = vsub.f32 %v118, %v126
    %v128 = vsub.f32 %v120, %v126
    %v129 = vmul.f32 %v127, 1.442695
    %v130 = vpow.pop %v129
    %v131 = vmul.f32 %v128, 1.442695
    %v132 = vpow.pop %v131
    %v133 = vadd.f32 %v130, %v132
    %134 = vadd.xlane.f32.xlu0 %v133
    %v135 = vpop.xlane.xlu0 %134
    %v136 = vlog2.pop %v135
    %v137 = vmul.f32 %v136, 0.6931472
    %v138 = vsub.f32 %v127, %v137
    %v139 = vsub.f32 %v128, %v137
    %140 = vst [vmem:[#allocation7] sm:$0xff] %v138
    %141 = vst [vmem:[#allocation7 + $0x8] sm:$0xff] %v139
    // Predicated region
    $region22: #{tpu_custom_call.1} parent=1 // pred_check
      _
    $region23: #{tpu_custom_call.1} parent=1 // pred_check_branch
      %143 = sbr.rel (0) target = $region25
    $region24: #{tpu_custom_call.1} parent=1 // pred_region
      %s145 = ssub.s32 256, 256
      %146 = vsyncadd [#allocation4], %s145
      %s148 = sshll.u32 [#allocation7], 4
      %s149 = int_to_ptr.vmem [resolvable:$true] %s148
      %151 = dma.vmem_to_hbm [thread:$0]  %s149, 256, %s3, [#allocation4]
    $region25: #{tpu_custom_call.1} parent=1 // pred_fallthru
      _
    // Predicated region
    $region26: #{tpu_custom_call.1} parent=1 // pred_check
      _
    $region27: #{tpu_custom_call.1} parent=1 // pred_check_branch
      %153 = sbr.rel (0) target = $region29
    $region28: #{tpu_custom_call.1} parent=1 // pred_region
      %154 = dma.done [#allocation4], 256
    $region29: #{tpu_custom_call.1} parent=1 // pred_fallthru
      _
    %155 = vsyncpa [#allocation3], 1
    %156 = vsyncpa [#allocation6], 1
    %157 = vsyncpa [#allocation4], 1

</llo_original>
